<compile_context>
chip_gen: v7x
topology: tpu7x:2x2x1
jax: 0.10.0
libtpu: 0.0.40
codegen_flags: <defaults>
</compile_context>

<pallas_src>
import functools

import jax
import jax.numpy as jnp
from jax.experimental import pallas as pl
from jax.experimental.pallas import tpu as pltpu


LANE = 128


def _round_up(x, m):
    return ((x + m - 1) // m) * m


def _choose_tile(dim, target, granularity):
    """Largest multiple of `granularity` <= target that divides `dim`."""
    t = max((min(target, dim) // granularity) * granularity, granularity)
    while dim % t:
        t -= granularity
    return t


@functools.lru_cache(maxsize=1)
def _vmem_budget_bytes():
    cap = None
    try:
        info = pltpu.get_tpu_info()
        cap = getattr(info, "vmem_capacity_bytes", None)
    except Exception:
        cap = None
    if not cap:
        cap = 64 * 1024 * 1024   # v7x physical VMEM: safest floor across chips
    return int(cap) * 3 // 4     # leave headroom for compiler scratch


def _select_config(M, K, N, has_bias, out_bytes, budget, target_tm, target_tk):
    """VMEM-aware (tm, tk, rhs_resident) selection."""
    tm_cap = M // 2 if M >= 16 else M     # >= 2 row tiles -> both v7x cores busy
    tm = _choose_tile(M, min(target_tm, tm_cap), 8)
    tk = _choose_tile(K, target_tk, LANE)
    rhs_resident = True

    def footprint(tm_, tk_, resident):
        lhs = 2 * tm_ * tk_ * 2                        # bf16, double-buffered
        rhs = 2 * (K if resident else tk_) * N * 2     # bf16 (conservatively x2)
        out = 2 * tm_ * N * out_bytes
        acc = 0 if tk_ == K else tm_ * N * 4           # single-K path: no scratch
        b = 2 * N * 4 if has_bias else 0
        return lhs + rhs + out + acc + b

    while footprint(tm, tk, rhs_resident) > budget:
        if rhs_resident and 2 * K * N * 2 > budget // 2:
            rhs_resident = False
        elif tk > LANE:
            tk = _choose_tile(K, tk // 2, LANE)
        elif tm > 8:
            tm = _choose_tile(M, tm // 2, 8)
        else:
            break
    return tm, tk, rhs_resident


# ----------------------------- Pallas kernels ------------------------------- #

def _mm_single_kernel(*refs, has_bias, apply_relu):
    """Single K step: out = lhs @ rhs (+bias)(relu), no accumulator scratch."""
    if has_bias:
        lhs_ref, rhs_ref, bias_ref, o_ref = refs
    else:
        lhs_ref, rhs_ref, o_ref = refs
        bias_ref = None
    acc = jnp.dot(lhs_ref[...], rhs_ref[...], preferred_element_type=jnp.float32)
    if bias_ref is not None:
        acc = acc + bias_ref[...]
    if apply_relu:
        acc = jnp.maximum(acc, 0.0)
    o_ref[...] = acc.astype(o_ref.dtype)


def _mm_multi_kernel(*refs, has_bias, apply_relu, tk, rhs_resident):
    """Multi K step: fp32 VMEM accumulator, direct assign at k==0, fused epilogue.

    When rhs_resident, rhs_ref holds the full (K, N) operand (DMA'd once) and the
    K window is sliced in-kernel with pl.ds.
    """
    if has_bias:
        lhs_ref, rhs_ref, bias_ref, o_ref, acc_ref = refs
    else:
        lhs_ref, rhs_ref, o_ref, acc_ref = refs
        bias_ref = None

    k = pl.program_id(1)
    if rhs_resident:
        k_start = pl.multiple_of(k * tk, LANE)
        rhs_tile = rhs_ref[pl.ds(k_start, tk), :]
    else:
        rhs_tile = rhs_ref[...]

    partial = jnp.dot(lhs_ref[...], rhs_tile, preferred_element_type=jnp.float32)

    @pl.when(k == 0)
    def _():
        acc_ref[...] = partial

    @pl.when(k > 0)
    def _():
        acc_ref[...] += partial

    @pl.when(k == pl.num_programs(1) - 1)
    def _():
        acc = acc_ref[...]
        if bias_ref is not None:
            acc = acc + bias_ref[...]            # (1, N) broadcast over rows
        if apply_relu:
            acc = jnp.maximum(acc, 0.0)
        o_ref[...] = acc.astype(o_ref.dtype)


def pallas_matmul(lhs, rhs, bias=None, *, apply_relu=False,
                  out_dtype=jnp.bfloat16, target_tm=512, target_tk=1024):
    """out = lhs @ rhs (+ bias) (relu).  bf16 MXU inputs, fp32 accumulation.

    Inputs must already be bf16 and pre-padded: M % 8 == 0, K % 128 == 0,
    N % 128 == 0 (lane-dense stores, full MXU columns).
    """
    M, K = lhs.shape
    K2, N = rhs.shape
    assert K == K2
    assert M % 8 == 0 and K % LANE == 0 and N % LANE == 0
    assert lhs.dtype == jnp.bfloat16 and rhs.dtype == jnp.bfloat16

    has_bias = bias is not None
    out_bytes = jnp.dtype(out_dtype).itemsize
    budget = _vmem_budget_bytes()
    tm, tk, rhs_resident = _select_config(M, K, N, has_bias, out_bytes, budget,
                                          target_tm, target_tk)

    operands = [lhs, rhs]
    if has_bias:
        bias_op = bias.reshape(1, N).astype(jnp.float32)

    if tk == K:
        # Single K step: no scratch, 1-D grid, RHS resident (constant index_map).
        in_specs = [pl.BlockSpec((tm, K), lambda i: (i, 0)),
                    pl.BlockSpec((K, N), lambda i: (0, 0))]
        if has_bias:
            in_specs.append(pl.BlockSpec((1, N), lambda i: (0, 0)))
            operands.append(bias_op)
        kernel = functools.partial(_mm_single_kernel, has_bias=has_bias,
                                   apply_relu=apply_relu)
        grid = (M // tm,)
        out_specs = pl.BlockSpec((tm, N), lambda i: (i, 0))
        scratch = []
        dims = ("parallel",)
    else:
        if rhs_resident:
            rhs_spec = pl.BlockSpec((K, N), lambda i, k: (0, 0))   # DMA'd once
        else:
            rhs_spec = pl.BlockSpec((tk, N), lambda i, k: (k, 0))  # streamed fallback
        in_specs = [pl.BlockSpec((tm, tk), lambda i, k: (i, k)), rhs_spec]
        if has_bias:
            in_specs.append(pl.BlockSpec((1, N), lambda i, k: (0, 0)))
            operands.append(bias_op)
        kernel = functools.partial(_mm_multi_kernel, has_bias=has_bias,
                                   apply_relu=apply_relu, tk=tk,
                                   rhs_resident=rhs_resident)
        grid = (M // tm, K // tk)
        out_specs = pl.BlockSpec((tm, N), lambda i, k: (i, 0))
        scratch = [pltpu.VMEM((tm, N), jnp.float32)]
        dims = ("parallel", "arbitrary")

    return pl.pallas_call(
        kernel,
        out_shape=jax.ShapeDtypeStruct((M, N), out_dtype),
        grid_spec=pltpu.PrefetchScalarGridSpec(
            num_scalar_prefetch=0,
            grid=grid,
            in_specs=in_specs,
            out_specs=out_specs,
            scratch_shapes=scratch,
        ),
        compiler_params=pltpu.CompilerParams(
            dimension_semantics=dims,
            vmem_limit_bytes=budget,
        ),
    )(*operands)


# ------------------------------ JAX glue ------------------------------------ #

def gcn_normalized_adjacency_padded(edge_index, num_nodes, n_pad):
    """Dense D^{-1/2} (A + I_remaining) D^{-1/2}, built directly at padded size.

    add_remaining_self_loops semantics: unit self loop only for real nodes that
    do not already have one.  Padded rows/cols stay exactly zero (deg = 0).
    Returned in bf16 (cast once, before the layer loop).
    """
    src = edge_index[0].astype(jnp.int32)
    dst = edge_index[1].astype(jnp.int32)
    flat = dst * n_pad + src                              # message flows src -> dst
    adj = jnp.zeros((n_pad * n_pad,), jnp.float32).at[flat].add(1.0)
    adj = adj.reshape(n_pad, n_pad)

    node_ids = jnp.arange(n_pad, dtype=jnp.int32)
    real = node_ids < num_nodes
    diag = jnp.diagonal(adj)
    add_diag = jnp.where(real & (diag == 0.0), 1.0, 0.0)  # add *remaining* self loops
    adj = adj.at[node_ids, node_ids].add(add_diag)

    deg = adj.sum(axis=1)
    d_inv_sqrt = jnp.where(deg > 0, jax.lax.rsqrt(deg), 0.0)
    a_hat = (d_inv_sqrt[:, None] * adj) * d_inv_sqrt[None, :]
    return a_hat.astype(jnp.bfloat16)


def gnn_forward(params, x, edge_index, *, hidden_dim):
    """Full GCN forward (jitted): pad once, build A_hat once, run Pallas matmuls."""
    num_nodes, input_dim = x.shape
    n_pad = _round_up(num_nodes, LANE)
    d_pad = _round_up(input_dim, LANE)

    a_hat = gcn_normalized_adjacency_padded(edge_index, num_nodes, n_pad)  # bf16, once

    h = jnp.zeros((n_pad, d_pad), jnp.bfloat16)
    h = h.at[:num_nodes, :input_dim].set(x.astype(jnp.bfloat16))

    num_layers = len(params)
    for l, (w, b) in enumerate(params):
        is_last = l == num_layers - 1
        # GCNConv: z = h @ W (no bias), then A_hat @ z + b; relu between layers only.
        z = pallas_matmul(h, w, bias=None, apply_relu=False, out_dtype=jnp.bfloat16)
        h = pallas_matmul(a_hat, z, bias=b, apply_relu=not is_last,
                          out_dtype=jnp.float32 if is_last else jnp.bfloat16,
                          target_tm=1024)
    return h[:num_nodes, :hidden_dim]


class GraphNeuralNetworkPallas:
    """GCN backbone with `num_layers` GCNConv layers (single prediction head)."""

    def __init__(self, input_dim, hidden_dim, num_layers, key):
        self.input_dim = input_dim
        self.hidden_dim = hidden_dim
        layers = []
        dims = [input_dim] + [hidden_dim] * num_layers
        for l in range(num_layers):
            key, wk = jax.random.split(key)
            fan_in, fan_out = dims[l], dims[l + 1]
            # deterministic glorot-uniform-like init (synthetic; no checkpoint load)
            limit = (6.0 / (fan_in + fan_out)) ** 0.5
            w = jax.random.uniform(wk, (fan_in, fan_out), jnp.float32, -limit, limit)
            b = jnp.zeros((fan_out,), jnp.float32)
            # zero-pad to 128-multiple lane dims + cast weight to bf16 once, at init
            fi_p = _round_up(fan_in, LANE)
            fo_p = _round_up(fan_out, LANE)
            w_p = (jnp.zeros((fi_p, fo_p), jnp.float32)
                   .at[:fan_in, :fan_out].set(w).astype(jnp.bfloat16))
            b_p = jnp.zeros((fo_p,), jnp.float32).at[:fan_out].set(b)
            layers.append((w_p, b_p))
        self.params = tuple(layers)
        self._forward = jax.jit(functools.partial(gnn_forward, hidden_dim=hidden_dim))

    def __call__(self, x, edge_index):
        return self._forward(self.params, x, edge_index)


def _reference_forward(model, x, edge_index):
    """Pure-JAX reference mirroring the kernel's bf16-in / fp32-accumulate precision."""
    num_nodes, input_dim = x.shape
    n_pad = _round_up(num_nodes, LANE)
    d_pad = _round_up(input_dim, LANE)
    a_hat = gcn_normalized_adjacency_padded(edge_index, num_nodes, n_pad).astype(jnp.float32)
    h = jnp.zeros((n_pad, d_pad), jnp.float32).at[:num_nodes, :input_dim].set(x)
    h = h.astype(jnp.bfloat16).astype(jnp.float32)
    L = len(model.params)
    for l, (w, b) in enumerate(model.params):
        z = (h @ w.astype(jnp.float32)).astype(jnp.bfloat16).astype(jnp.float32)
        h = a_hat @ z + b[None, :]
        if l < L - 1:
            h = jnp.maximum(h, 0.0).astype(jnp.bfloat16).astype(jnp.float32)
    return h[:num_nodes, :model.hidden_dim]


# ------------------------------- demo --------------------------------------- #

if __name__ == "__main__":
    key = jax.random.PRNGKey(0)
    k_feat, k_edge, k_param, k_a, k_b = jax.random.split(key, 5)

    num_nodes = 64
    input_dim = 16
    hidden_dim = 32
    num_layers = 2
    num_edges = 128

    x = jax.random.normal(k_feat, (num_nodes, input_dim), jnp.float32)
    edge_index = jax.random.randint(k_edge, (2, num_edges), 0, num_nodes, jnp.int32)

    model = GraphNeuralNetworkPallas(input_dim, hidden_dim, num_layers, k_param)
    out = model(x, edge_index)
    out = jax.block_until_ready(out)

    assert out.shape == (num_nodes, hidden_dim)
    assert jnp.all(jnp.isfinite(out))

    # Cross-check full forward against a precision-matched pure-JAX reference.
    ref = _reference_forward(model, x, edge_index)
    tol = 1e-2 * (1.0 + float(jnp.max(jnp.abs(ref))))
    assert float(jnp.max(jnp.abs(out - ref))) < tol

    # Also exercise the multi-K (resident-RHS, fp32-accumulator) kernel path.
    a = jax.random.normal(k_a, (128, 256), jnp.float32).astype(jnp.bfloat16)
    bmat = jax.random.normal(k_b, (256, 128), jnp.float32).astype(jnp.bfloat16)
    got = pallas_matmul(a, bmat, bias=None, apply_relu=False,
                        out_dtype=jnp.float32, target_tk=128)
    want = a.astype(jnp.float32) @ bmat.astype(jnp.float32)
    got = jax.block_until_ready(got)
    assert float(jnp.max(jnp.abs(got - want))) < 1e-2 * (1.0 + float(jnp.max(jnp.abs(want))))

    print("KERNEL_OK")
</pallas_src>

<mosaic_0001>
module attributes {stable_mosaic.version = 11 : i64} {
  func.func private @main(%arg0: i32) attributes {dimension_semantics = [#tpu.dimension_semantics<core_parallel>], iteration_bounds = array<i64: 2>, tpu.core_type = #tpu.core_type<sc_scalar_subcore>, window_params = []} {
    return
  }
}

module attributes {stable_mosaic.version = 11 : i64} {
  func.func private @main(%arg0: i32) attributes {dimension_semantics = [#tpu.dimension_semantics<core_parallel>], iteration_bounds = array<i64: 2>, tpu.core_type = #tpu.core_type<sc_scalar_subcore>, window_params = []} {
    return
  }
}

module attributes {stable_mosaic.version = 11 : i64} {
  func.func @_mm_single_kernel(%arg0: i32, %arg1: memref<64x128xbf16, #tpu.memory_space<vmem>>, %arg2: memref<128x128xbf16, #tpu.memory_space<vmem>>, %arg3: memref<64x128xbf16, #tpu.memory_space<vmem>>) attributes {dimension_semantics = [#tpu.dimension_semantics<parallel>], iteration_bounds = array<i64: 2>, scalar_prefetch = 0 : i64, scratch_operands = 0 : i64, tpu.core_type = #tpu.core_type<tc>, window_params = [{transform_indices = @transform_0, window_bounds = array<i64: 64, 128>}, {pipeline_mode = #tpu.pipeline_mode<synchronous>, transform_indices = @transform_1, window_bounds = array<i64: 128, 128>}, {transform_indices = @transform_2, window_bounds = array<i64: 64, 128>}]} {
    %c0 = arith.constant 0 : index
    %c0_0 = arith.constant 0 : index
    %0 = vector.load %arg1[%c0, %c0_0] : memref<64x128xbf16, #tpu.memory_space<vmem>>, vector<64x128xbf16>
    %c0_1 = arith.constant 0 : index
    %c0_2 = arith.constant 0 : index
    %1 = vector.load %arg2[%c0_1, %c0_2] : memref<128x128xbf16, #tpu.memory_space<vmem>>, vector<128x128xbf16>
    %cst = arith.constant dense<0.000000e+00> : vector<64x128xf32>
    %2 = tpu.matmul %0, %1, %cst {dimension_numbers = #tpu.dot_dimension_numbers<[1], [0], [0], [1], [0, 0, 1, 1], [], []>} : vector<64x128xbf16>, vector<128x128xbf16>, vector<64x128xf32> -> vector<64x128xf32>
    %3 = arith.truncf %2 : vector<64x128xf32> to vector<64x128xbf16>
    %c0_3 = arith.constant 0 : index
    %c0_4 = arith.constant 0 : index
    %4 = vector.load %arg3[%c0_3, %c0_4] : memref<64x128xbf16, #tpu.memory_space<vmem>>, vector<64x128xbf16>
    tpu.vector_store %arg3[%c0_3, %c0_4], %3 {strides = array<i32>} : memref<64x128xbf16, #tpu.memory_space<vmem>>, vector<64x128xbf16>,
    return
  }
  func.func @transform_0(%arg0: i32) -> (i32, i32) {
    %c0_i32 = arith.constant 0 : i32
    %c0_i32_0 = arith.constant 0 : i32
    return %arg0, %c0_i32 : i32, i32
  }
  func.func @transform_1(%arg0: i32) -> (i32, i32) {
    %c0_i32 = arith.constant 0 : i32
    %c0_i32_0 = arith.constant 0 : i32
    %c0_i32_1 = arith.constant 0 : i32
    return %c0_i32, %c0_i32_0 : i32, i32
  }
  func.func @transform_2(%arg0: i32) -> (i32, i32) {
    %c0_i32 = arith.constant 0 : i32
    %c0_i32_0 = arith.constant 0 : i32
    return %arg0, %c0_i32 : i32, i32
  }
}

module attributes {stable_mosaic.version = 11 : i64} {
  func.func @_mm_single_kernel(%arg0: i32, %arg1: memref<64x128xbf16, #tpu.memory_space<vmem>>, %arg2: memref<128x128xbf16, #tpu.memory_space<vmem>>, %arg3: memref<1x128xf32, #tpu.memory_space<vmem>>, %arg4: memref<64x128xbf16, #tpu.memory_space<vmem>>) attributes {dimension_semantics = [#tpu.dimension_semantics<parallel>], iteration_bounds = array<i64: 2>, scalar_prefetch = 0 : i64, scratch_operands = 0 : i64, tpu.core_type = #tpu.core_type<tc>, window_params = [{transform_indices = @transform_0, window_bounds = array<i64: 64, 128>}, {pipeline_mode = #tpu.pipeline_mode<synchronous>, transform_indices = @transform_1, window_bounds = array<i64: 128, 128>}, {pipeline_mode = #tpu.pipeline_mode<synchronous>, transform_indices = @transform_2, window_bounds = array<i64: 1, 128>}, {transform_indices = @transform_3, window_bounds = array<i64: 64, 128>}]} {
    %c0 = arith.constant 0 : index
    %c0_0 = arith.constant 0 : index
    %0 = vector.load %arg1[%c0, %c0_0] : memref<64x128xbf16, #tpu.memory_space<vmem>>, vector<64x128xbf16>
    %c0_1 = arith.constant 0 : index
    %c0_2 = arith.constant 0 : index
    %1 = vector.load %arg2[%c0_1, %c0_2] : memref<128x128xbf16, #tpu.memory_space<vmem>>, vector<128x128xbf16>
    %cst = arith.constant dense<0.000000e+00> : vector<64x128xf32>
    %2 = tpu.matmul %0, %1, %cst {dimension_numbers = #tpu.dot_dimension_numbers<[1], [0], [0], [1], [0, 0, 1, 1], [], []>} : vector<64x128xbf16>, vector<128x128xbf16>, vector<64x128xf32> -> vector<64x128xf32>
    %c0_3 = arith.constant 0 : index
    %c0_4 = arith.constant 0 : index
    %3 = vector.load %arg3[%c0_3, %c0_4] : memref<1x128xf32, #tpu.memory_space<vmem>>, vector<1x128xf32>
    %4 = vector.broadcast %3 : vector<1x128xf32> to vector<64x128xf32>
    %5 = arith.addf %2, %4 : vector<64x128xf32>
    %cst_5 = arith.constant 0.000000e+00 : f32
    %6 = vector.broadcast %cst_5 : f32 to vector<64x128xf32>
    %7 = arith.maximumf %5, %6 : vector<64x128xf32>
    %8 = arith.truncf %7 : vector<64x128xf32> to vector<64x128xbf16>
    %c0_6 = arith.constant 0 : index
    %c0_7 = arith.constant 0 : index
    %9 = vector.load %arg4[%c0_6, %c0_7] : memref<64x128xbf16, #tpu.memory_space<vmem>>, vector<64x128xbf16>
    tpu.vector_store %arg4[%c0_6, %c0_7], %8 {strides = array<i32>} : memref<64x128xbf16, #tpu.memory_space<vmem>>, vector<64x128xbf16>,
    return
  }
  func.func @transform_0(%arg0: i32) -> (i32, i32) {
    %c0_i32 = arith.constant 0 : i32
    %c0_i32_0 = arith.constant 0 : i32
    return %arg0, %c0_i32 : i32, i32
  }
  func.func @transform_1(%arg0: i32) -> (i32, i32) {
    %c0_i32 = arith.constant 0 : i32
    %c0_i32_0 = arith.constant 0 : i32
    %c0_i32_1 = arith.constant 0 : i32
    return %c0_i32, %c0_i32_0 : i32, i32
  }
  func.func @transform_2(%arg0: i32) -> (i32, i32) {
    %c0_i32 = arith.constant 0 : i32
    %c0_i32_0 = arith.constant 0 : i32
    %c0_i32_1 = arith.constant 0 : i32
    return %c0_i32, %c0_i32_0 : i32, i32
  }
  func.func @transform_3(%arg0: i32) -> (i32, i32) {
    %c0_i32 = arith.constant 0 : i32
    %c0_i32_0 = arith.constant 0 : i32
    return %arg0, %c0_i32 : i32, i32
  }
}

module attributes {stable_mosaic.version = 11 : i64} {
  func.func @_mm_single_kernel(%arg0: i32, %arg1: memref<64x128xbf16, #tpu.memory_space<vmem>>, %arg2: memref<128x128xbf16, #tpu.memory_space<vmem>>, %arg3: memref<1x128xf32, #tpu.memory_space<vmem>>, %arg4: memref<64x128xf32, #tpu.memory_space<vmem>>) attributes {dimension_semantics = [#tpu.dimension_semantics<parallel>], iteration_bounds = array<i64: 2>, scalar_prefetch = 0 : i64, scratch_operands = 0 : i64, tpu.core_type = #tpu.core_type<tc>, window_params = [{transform_indices = @transform_0, window_bounds = array<i64: 64, 128>}, {pipeline_mode = #tpu.pipeline_mode<synchronous>, transform_indices = @transform_1, window_bounds = array<i64: 128, 128>}, {pipeline_mode = #tpu.pipeline_mode<synchronous>, transform_indices = @transform_2, window_bounds = array<i64: 1, 128>}, {transform_indices = @transform_3, window_bounds = array<i64: 64, 128>}]} {
    %c0 = arith.constant 0 : index
    %c0_0 = arith.constant 0 : index
    %0 = vector.load %arg1[%c0, %c0_0] : memref<64x128xbf16, #tpu.memory_space<vmem>>, vector<64x128xbf16>
    %c0_1 = arith.constant 0 : index
    %c0_2 = arith.constant 0 : index
    %1 = vector.load %arg2[%c0_1, %c0_2] : memref<128x128xbf16, #tpu.memory_space<vmem>>, vector<128x128xbf16>
    %cst = arith.constant dense<0.000000e+00> : vector<64x128xf32>
    %2 = tpu.matmul %0, %1, %cst {dimension_numbers = #tpu.dot_dimension_numbers<[1], [0], [0], [1], [0, 0, 1, 1], [], []>} : vector<64x128xbf16>, vector<128x128xbf16>, vector<64x128xf32> -> vector<64x128xf32>
    %c0_3 = arith.constant 0 : index
    %c0_4 = arith.constant 0 : index
    %3 = vector.load %arg3[%c0_3, %c0_4] : memref<1x128xf32, #tpu.memory_space<vmem>>, vector<1x128xf32>
    %4 = vector.broadcast %3 : vector<1x128xf32> to vector<64x128xf32>
    %5 = arith.addf %2, %4 : vector<64x128xf32>
    %c0_5 = arith.constant 0 : index
    %c0_6 = arith.constant 0 : index
    %6 = vector.load %arg4[%c0_5, %c0_6] : memref<64x128xf32, #tpu.memory_space<vmem>>, vector<64x128xf32>
    tpu.vector_store %arg4[%c0_5, %c0_6], %5 {strides = array<i32>} : memref<64x128xf32, #tpu.memory_space<vmem>>, vector<64x128xf32>,
    return
  }
  func.func @transform_0(%arg0: i32) -> (i32, i32) {
    %c0_i32 = arith.constant 0 : i32
    %c0_i32_0 = arith.constant 0 : i32
    return %arg0, %c0_i32 : i32, i32
  }
  func.func @transform_1(%arg0: i32) -> (i32, i32) {
    %c0_i32 = arith.constant 0 : i32
    %c0_i32_0 = arith.constant 0 : i32
    %c0_i32_1 = arith.constant 0 : i32
    return %c0_i32, %c0_i32_0 : i32, i32
  }
  func.func @transform_2(%arg0: i32) -> (i32, i32) {
    %c0_i32 = arith.constant 0 : i32
    %c0_i32_0 = arith.constant 0 : i32
    %c0_i32_1 = arith.constant 0 : i32
    return %c0_i32, %c0_i32_0 : i32, i32
  }
  func.func @transform_3(%arg0: i32) -> (i32, i32) {
    %c0_i32 = arith.constant 0 : i32
    %c0_i32_0 = arith.constant 0 : i32
    return %arg0, %c0_i32 : i32, i32
  }
}

</mosaic_0001>

<llo_original>
// kernel: gnn_forward.4
$region0: #{gnn_forward.4}
  #allocation0 [shape = 'u32[]', space=smem, size = 0x4, offset = 0x4, fixed_abs, tag = 'smem constant byte address 0x4 - core index']
  #allocation1 [shape = 'u32[144,128]{1,0:T(1,128)}', space=vmem, size = 0x12000, scoped, tag = 'internal scratch']
  %s0 = inlined_call_operand.vmem [shape: bf16[128,128], index: 0, kind: input, shape index: {}]
  %s1 = inlined_call_operand.vmem [shape: bf16[128,128], index: 1, kind: input, shape index: {}]
  %s2 = inlined_call_operand.vmem [shape: bf16[128,128], index: 2, kind: output, shape index: {}]
  %s3 = sld [smem:[#allocation0]]
  $region41: #{gnn_forward.4} parent=0
    _
  %s5 = ssub.s32 1, %s3
  %s6 = scalar_select 0, %s5, %s3
  loop: start=0, step=1, limit=4
  $region2: #{gnn_forward.4} parent=0 // loop_pre_header
    _
  $region3: #{gnn_forward.4} parent=0 // loop_header
    %s8 = sphi 0, %s12
    %p9 = scmp.ge.s32.totalorder %s8, 4
    %s18 = sphi 0, %s20
    %s21 = sphi 0, %s18
    %s22 = sphi 0, %s21
    %s38 = sphi 0, %s22
    %s42 = sphi 0, %s42
    %s44 = sphi 0, %s42
    %s45 = sphi 0, %s44
    %s59 = sphi 0, %s45
    %s65 = sphi 0, %s67
    %s68 = sphi 0, %s65
    %s69 = sphi 0, %s68
    %s85 = sphi 0, %s69
  $region4: #{gnn_forward.4} parent=0 // loop_header_branch
    %11 = sbr.rel (%p9) target = $region8
  $region5: #{gnn_forward.4} parent=0 // loop_body
    %s13 = ssub.s32 %s8, 1
    %s14 = ssub.s32 %s8, 2
    %s15 = sadd.s32 %s8, 1
    %s16 = ssub.s32 %s8, %s15
    %p17 = scmp.eq.s32.totalorder %s16, 0
    %s19 = sadd.s32 %s18, 1
    %s20 = scalar_select %p17, %s18, %s19
    %p23 = pneg %p17
    %p24 = scmp.eq.s32.totalorder %s8, 1
    %p25 = por %p23, %p24
    %p26 = scmp.ne.s32.totalorder %s18, %s21
    %p27 = scmp.eq.s32.totalorder %s8, 0
    %p28 = por %p26, %p27
    %p29 = scmp.ne.s32.totalorder %s18, %s21
    %p30 = scmp.eq.s32.totalorder %s13, 1
    %p31 = por %p29, %p30
    %p32 = scmp.ne.s32.totalorder %s21, %s22
    %p33 = scmp.eq.s32.totalorder %s13, 0
    %p34 = por %p32, %p33
    %p35 = scmp.ne.s32.totalorder %s21, %s22
    %p36 = scmp.eq.s32.totalorder %s14, 1
    %p37 = por %p35, %p36
    %p39 = scmp.ne.s32.totalorder %s22, %s38
    %p40 = scmp.eq.s32.totalorder %s14, 0
    %p41 = por %p39, %p40
    %s43 = sadd.s32 %s42, 1
    %p46 = scmp.eq.s32.totalorder %s8, 1
    %p47 = scmp.ne.s32.totalorder %s42, %s44
    %p48 = scmp.eq.s32.totalorder %s8, 0
    %p49 = por %p47, %p48
    %p50 = scmp.ne.s32.totalorder %s42, %s44
    %p51 = scmp.eq.s32.totalorder %s13, 1
    %p52 = por %p50, %p51
    %p53 = scmp.ne.s32.totalorder %s44, %s45
    %p54 = scmp.eq.s32.totalorder %s13, 0
    %p55 = por %p53, %p54
    %p56 = scmp.ne.s32.totalorder %s44, %s45
    %p57 = scmp.eq.s32.totalorder %s14, 1
    %p58 = por %p56, %p57
    %p60 = scmp.ne.s32.totalorder %s45, %s59
    %p61 = scmp.eq.s32.totalorder %s14, 0
    %p62 = por %p60, %p61
    %s63 = ssub.s32 %s8, %s15
    %p64 = scmp.eq.s32.totalorder %s63, 0
    %s66 = sadd.s32 %s65, 1
    %s67 = scalar_select %p64, %s65, %s66
    %p70 = pneg %p64
    %p71 = scmp.eq.s32.totalorder %s8, 1
    %p72 = por %p70, %p71
    %p73 = scmp.ne.s32.totalorder %s65, %s68
    %p74 = scmp.eq.s32.totalorder %s8, 0
    %p75 = por %p73, %p74
    %p76 = scmp.ne.s32.totalorder %s65, %s68
    %p77 = scmp.eq.s32.totalorder %s13, 1
    %p78 = por %p76, %p77
    %p79 = scmp.ne.s32.totalorder %s68, %s69
    %p80 = scmp.eq.s32.totalorder %s13, 0
    %p81 = por %p79, %p80
    %p82 = scmp.ne.s32.totalorder %s68, %s69
    %p83 = scmp.eq.s32.totalorder %s14, 1
    %p84 = por %p82, %p83
    %p86 = scmp.ne.s32.totalorder %s69, %s85
    %p87 = scmp.eq.s32.totalorder %s14, 0
    %p88 = por %p86, %p87
    %p89 = scmp.le.s32.totalorder 1, %s8
    %p90 = scmp.lt.s32.totalorder %s8, 3
    %p91 = pnand %p89, %p90
    %p92 = pneg %p91
    // Predicated region
    $region9: #{gnn_forward.4} parent=5 // pred_check
      _
    $region10: #{gnn_forward.4} parent=5 // pred_check_branch
      %94 = sbr.rel (%p91) target = $region12
    $region11: #{gnn_forward.4} parent=5 // pred_region
      %s95 = ssub.s32 %s8, 1
      // Predicated region
      $region13: #{gnn_forward.4} parent=11 // pred_check
        %p96 = pneg %p55
      $region14: #{gnn_forward.4} parent=11 // pred_check_branch
        %98 = sbr.rel (%p96) target = $region16
      $region15: #{gnn_forward.4} parent=11 // pred_region
        _
      $region16: #{gnn_forward.4} parent=11 // pred_fallthru
        _
    $region12: #{gnn_forward.4} parent=5 // pred_fallthru
      _
    %p99 = scmp.lt.s32.totalorder %s8, 2
    // Predicated region
    $region17: #{gnn_forward.4} parent=5 // pred_check
      %p100 = pneg %p99
    $region18: #{gnn_forward.4} parent=5 // pred_check_branch
      %102 = sbr.rel (%p100) target = $region20
    $region19: #{gnn_forward.4} parent=5 // pred_region
      // Predicated region
      $region21: #{gnn_forward.4} parent=19 // pred_check
        %p103 = pneg %p28
      $region22: #{gnn_forward.4} parent=19 // pred_check_branch
        %105 = sbr.rel (%p103) target = $region24
      $region23: #{gnn_forward.4} parent=19 // pred_region
        %s106 = smul.u32 8, %s8
        %p107 = scmp.lt.s32.totalorder %s106, 15
        %s108 = scalar_select %p107, %s106, 15
        %s109 = smul.addr %s108, 4
        %s110 = scalar_lea.vmem %s0, %s109
        %s111 = smul.u32 8, %s8
      $region24: #{gnn_forward.4} parent=19 // pred_fallthru
        _
    $region20: #{gnn_forward.4} parent=5 // pred_fallthru
      _
    %p112 = scmp.le.s32.totalorder 1, %s8
    %p113 = scmp.lt.s32.totalorder %s8, 3
    %p114 = pnand %p112, %p113
    %p115 = pneg %p114
    // Predicated region
    $region25: #{gnn_forward.4} parent=5 // pred_check
      _
    $region26: #{gnn_forward.4} parent=5 // pred_check_branch
      %117 = sbr.rel (%p114) target = $region28
    $region27: #{gnn_forward.4} parent=5 // pred_region
      %s118 = ssub.s32 %s8, 1
      %s119 = smul.u32 8, %s13
      %p120 = scmp.lt.s32.totalorder %s119, 15
      %s121 = scalar_select %p120, %s119, 15
      %s122 = smul.addr %s121, 4
      %s123 = scalar_lea.vmem %s0, %s122
      %p124 = pneg %p34
      %p125 = pneg %p31
      %p126 = pneg %p55
      %p127 = pneg %p52
      %p128 = pneg %p81
      %p129 = pneg %p78
      %s130 = smul.u32 8, %s13
      %p131 = scmp.lt.s32.totalorder %s130, 15
      %s132 = scalar_select %p131, %s130, 15
      %s133 = smul.addr %s132, 4
      %s134 = scalar_lea.vmem %s2, %s133
      %s135 = smul.u32 8, %s13
      %p136 = scmp.lt.s32.totalorder %s135, 15
      %s137 = scalar_select %p136, %s135, 15
      %s138 = smul.addr %s137, 4
      %s139 = scalar_lea.vmem %s0, %s138
      %s140 = smul.u32 8, %s13
      %s141 = smul.u32 8, %s13
      %p142 = scmp.lt.s32.totalorder %s141, 15
      %s143 = scalar_select %p142, %s141, 15
      %s144 = smul.addr %s143, 4
      %s145 = scalar_lea.vmem %s2, %s144
      %s146 = smul.u32 8, %s13
      %v148 = vld [vmem:[%s139] sm:$0xf]
      %v149 = vld [vmem:[%s139 + $0x4] sm:$0xf]
      %v150 = vld [vmem:[%s139 + $0x8] sm:$0xf]
      %v151 = vld [vmem:[%s139 + $0xc] sm:$0xf]
      %v152 = vld [vmem:[%s139 + $0x10] sm:$0xf]
      %v153 = vld [vmem:[%s139 + $0x14] sm:$0xf]
      %v154 = vld [vmem:[%s139 + $0x18] sm:$0xf]
      %v155 = vld [vmem:[%s139 + $0x1c] sm:$0xf]
      %v156 = vld [vmem:[%s1] sm:$0xf]
      %v157 = vld [vmem:[%s1 + $0x4] sm:$0xf]
      %v158 = vld [vmem:[%s1 + $0x8] sm:$0xf]
      %v159 = vld [vmem:[%s1 + $0xc] sm:$0xf]
      %v160 = vld [vmem:[%s1 + $0x10] sm:$0xf]
      %v161 = vld [vmem:[%s1 + $0x14] sm:$0xf]
      %v162 = vld [vmem:[%s1 + $0x18] sm:$0xf]
      %v163 = vld [vmem:[%s1 + $0x1c] sm:$0xf]
      %v164 = vld [vmem:[%s1 + $0x20] sm:$0xf]
      %v165 = vld [vmem:[%s1 + $0x24] sm:$0xf]
      %v166 = vld [vmem:[%s1 + $0x28] sm:$0xf]
      %v167 = vld [vmem:[%s1 + $0x2c] sm:$0xf]
      %v168 = vld [vmem:[%s1 + $0x30] sm:$0xf]
      %v169 = vld [vmem:[%s1 + $0x34] sm:$0xf]
      %v170 = vld [vmem:[%s1 + $0x38] sm:$0xf]
      %v171 = vld [vmem:[%s1 + $0x3c] sm:$0xf]
      %v180 = vunpack.c.l.b16 %v148
      %v181 = vunpack.c.l.b16 %v149
      %v182 = vunpack.c.l.b16 %v150
      %v183 = vunpack.c.l.b16 %v151
      %v184 = vunpack.c.l.b16 %v152
      %v185 = vunpack.c.l.b16 %v153
      %v186 = vunpack.c.l.b16 %v154
      %v187 = vunpack.c.l.b16 %v155
      %v188 = vpack.c.b16 %v181, %v180
      %v189 = vpack.c.b16 %v183, %v182
      %v190 = vpack.c.b16 %v185, %v184
      %v191 = vpack.c.b16 %v187, %v186
      %v212 = vunpack.c.l.b16 %v156
      %v213 = vunpack.c.l.b16 %v157
      %v214 = vunpack.c.l.b16 %v158
      %v215 = vunpack.c.l.b16 %v159
      %v216 = vunpack.c.l.b16 %v160
      %v217 = vunpack.c.l.b16 %v161
      %v218 = vunpack.c.l.b16 %v162
      %v219 = vunpack.c.l.b16 %v163
      %v220 = vunpack.c.l.b16 %v164
      %v221 = vunpack.c.l.b16 %v165
      %v222 = vunpack.c.l.b16 %v166
      %v223 = vunpack.c.l.b16 %v167
      %v224 = vunpack.c.l.b16 %v168
      %v225 = vunpack.c.l.b16 %v169
      %v226 = vunpack.c.l.b16 %v170
      %v227 = vunpack.c.l.b16 %v171
      %v228 = vpack.c.b16 %v213, %v212
      %v229 = vpack.c.b16 %v215, %v214
      %v230 = vpack.c.b16 %v217, %v216
      %v231 = vpack.c.b16 %v219, %v218
      %v232 = vpack.c.b16 %v221, %v220
      %v233 = vpack.c.b16 %v223, %v222
      %v234 = vpack.c.b16 %v225, %v224
      %v235 = vpack.c.b16 %v227, %v226
      %244 = vmatprep.subr.bf16.mxu0 0
      %245 = vmatpush1.bf16.msra.mxu0 %v228
      %246 = vmatprep.subr.bf16.mxu0 0
      %247 = vmatpush1.bf16.msra.mxu0 %v229
      %248 = vmatprep.subr.bf16.mxu0 0
      %249 = vmatpush1.bf16.msra.mxu0 %v230
      %250 = vmatprep.subr.bf16.mxu0 0
      %251 = vmatpush1.bf16.msra.mxu0 %v231
      %252 = vmatprep.subr.bf16.mxu0 0
      %253 = vmatpush1.bf16.msra.mxu0 %v232
      %254 = vmatprep.subr.bf16.mxu0 0
      %255 = vmatpush1.bf16.msra.mxu0 %v233
      %256 = vmatprep.subr.bf16.mxu0 0
      %257 = vmatpush1.bf16.msra.mxu0 %v234
      %258 = vmatprep.subr.bf16.mxu0 0
      %259 = vmatpush1.bf16.msra.mxu0 %v235
      %260 = vmatprep.subr.bf16.mxu0 0
      %261 = vmatpush1.bf16.msra.mxu0 0
      %262 = vmatprep.subr.bf16.mxu0 0
      %263 = vmatpush1.bf16.msra.mxu0 0
      %264 = vmatprep.subr.bf16.mxu0 0
      %265 = vmatpush1.bf16.msra.mxu0 0
      %266 = vmatprep.subr.bf16.mxu0 0
      %267 = vmatpush1.bf16.msra.mxu0 0
      %268 = vmatprep.subr.bf16.mxu0 0
      %269 = vmatpush1.bf16.msra.mxu0 0
      %270 = vmatprep.subr.bf16.mxu0 0
      %271 = vmatpush1.bf16.msra.mxu0 0
      %272 = vmatprep.subr.bf16.mxu0 0
      %273 = vmatpush1.bf16.msra.mxu0 0
      %274 = vmatprep.subr.bf16.mxu0 0
      %275 = vmatpush1.bf16.msra.mxu0 0
      %276 = vmatprep.mubr.bf16.mxu0 0
      %277 = vmatmul.mubr.bf16.gmra.mrb[0].mxu0 %v188
      %v278 = vpop.f32.mrb[0].mxu0
      %v279 = vadd.f32 0.0, %v278
      %v280 = vpop.f32.mrb[0].mxu0
      %v281 = vpop.f32.mrb[0].mxu0
      %v282 = vadd.f32 0.0, %v281
      %v283 = vpop.f32.mrb[0].mxu0
      %284 = vmatprep.mubr.bf16.mxu0 0
      %285 = vmatmul.mubr.bf16.gmra.mrb[0].mxu0 %v189
      %v286 = vpop.f32.mrb[0].mxu0
      %v287 = vadd.f32 0.0, %v286
      %v288 = vpop.f32.mrb[0].mxu0
      %v289 = vpop.f32.mrb[0].mxu0
      %v290 = vadd.f32 0.0, %v289
      %v291 = vpop.f32.mrb[0].mxu0
      %292 = vmatprep.mubr.bf16.mxu0 0
      %293 = vmatmul.mubr.bf16.gmra.mrb[0].mxu0 %v190
      %v294 = vpop.f32.mrb[0].mxu0
      %v295 = vadd.f32 0.0, %v294
      %v296 = vpop.f32.mrb[0].mxu0
      %v297 = vpop.f32.mrb[0].mxu0
      %v298 = vadd.f32 0.0, %v297
      %v299 = vpop.f32.mrb[0].mxu0
      %300 = vmatprep.mubr.bf16.mxu0 0
      %301 = vmatmul.mubr.bf16.gmra.mrb[0].mxu0 %v191
      %v302 = vpop.f32.mrb[0].mxu0
      %v303 = vadd.f32 0.0, %v302
      %v304 = vpop.f32.mrb[0].mxu0
      %v305 = vpop.f32.mrb[0].mxu0
      %v306 = vadd.f32 0.0, %v305
      %v307 = vpop.f32.mrb[0].mxu0
      %308 = vdwg.mxu0
      %v309 = vpack.c.bf16 %v282, %v279
      %v310 = vpack.c.bf16 %v290, %v287
      %v311 = vpack.c.bf16 %v298, %v295
      %v312 = vpack.c.bf16 %v306, %v303
      %v317 = vunpack.c.l.b16 %v309
      %v318 = vunpack.c.h.b16 %v309
      %v319 = vunpack.c.l.b16 %v310
      %v320 = vunpack.c.h.b16 %v310
      %v321 = vunpack.c.l.b16 %v311
      %v322 = vunpack.c.h.b16 %v311
      %v323 = vunpack.c.l.b16 %v312
      %v324 = vunpack.c.h.b16 %v312
      %v325 = vpack.c.b16 %v317, %v317
      %v326 = vpack.c.b16 %v318, %v318
      %v327 = vpack.c.b16 %v319, %v319
      %v328 = vpack.c.b16 %v320, %v320
      %v329 = vpack.c.b16 %v321, %v321
      %v330 = vpack.c.b16 %v322, %v322
      %v331 = vpack.c.b16 %v323, %v323
      %v332 = vpack.c.b16 %v324, %v324
      %341 = vst [vmem:[%s145] sm:$0xf] %v325
      %342 = vst [vmem:[%s145 + $0x4] sm:$0xf] %v326
      %343 = vst [vmem:[%s145 + $0x8] sm:$0xf] %v327
      %344 = vst [vmem:[%s145 + $0xc] sm:$0xf] %v328
      %345 = vst [vmem:[%s145 + $0x10] sm:$0xf] %v329
      %346 = vst [vmem:[%s145 + $0x14] sm:$0xf] %v330
      %347 = vst [vmem:[%s145 + $0x18] sm:$0xf] %v331
      %348 = vst [vmem:[%s145 + $0x1c] sm:$0xf] %v332
      %s349 = smul.u32 8, %s13
      %p350 = scmp.lt.s32.totalorder %s349, 15
      %s351 = scalar_select %p350, %s349, 15
      %s352 = smul.addr %s351, 4
      %s353 = scalar_lea.vmem %s2, %s352
      // Predicated region
      $region29: #{gnn_forward.4} parent=27 // pred_check
        %p354 = pneg %p78
      $region30: #{gnn_forward.4} parent=27 // pred_check_branch
        %356 = sbr.rel (%p354) target = $region32
      $region31: #{gnn_forward.4} parent=27 // pred_region
        %s357 = smul.u32 8, %s13
      $region32: #{gnn_forward.4} parent=27 // pred_fallthru
        _
    $region28: #{gnn_forward.4} parent=5 // pred_fallthru
      _
    %p358 = scmp.le.s32.totalorder 2, %s8
    // Predicated region
    $region33: #{gnn_forward.4} parent=5 // pred_check
      %p359 = pneg %p358
    $region34: #{gnn_forward.4} parent=5 // pred_check_branch
      %361 = sbr.rel (%p359) target = $region36
    $region35: #{gnn_forward.4} parent=5 // pred_region
      %s362 = ssub.s32 %s8, 2
      // Predicated region
      $region37: #{gnn_forward.4} parent=35 // pred_check
        %p363 = pneg %p84
      $region38: #{gnn_forward.4} parent=35 // pred_check_branch
        %365 = sbr.rel (%p363) target = $region40
      $region39: #{gnn_forward.4} parent=35 // pred_region
        %s366 = smul.u32 8, %s14
        %p367 = scmp.lt.s32.totalorder %s366, 15
        %s368 = scalar_select %p367, %s366, 15
        %s369 = smul.addr %s368, 4
        %s370 = scalar_lea.vmem %s2, %s369
      $region40: #{gnn_forward.4} parent=35 // pred_fallthru
        _
    $region36: #{gnn_forward.4} parent=5 // pred_fallthru
      _
  $region6: #{gnn_forward.4} parent=0 // loop_footer
    %s12 = sadd.s32 1, %s8
  $region7: #{gnn_forward.4} parent=0 // loop_footer_branch
    %7 = sbr.rel target = $region3
  $region8: #{gnn_forward.4} parent=0 // loop_exit
    _

// kernel: gnn_forward.5
$region0: #{gnn_forward.5}
  #allocation0 [shape = 'u32[]', space=smem, size = 0x4, offset = 0x4, fixed_abs, tag = 'smem constant byte address 0x4 - core index']
  #allocation1 [shape = 'u32[144,128]{1,0:T(1,128)}', space=vmem, size = 0x12000, scoped, tag = 'internal scratch']
  %s0 = inlined_call_operand.vmem [shape: bf16[128,128], index: 0, kind: input, shape index: {}]
  %s1 = inlined_call_operand.vmem [shape: bf16[128,128], index: 1, kind: input, shape index: {}]
  %s2 = inlined_call_operand.vmem [shape: f32[1,128], index: 2, kind: input, shape index: {}]
  %s3 = inlined_call_operand.vmem [shape: bf16[128,128], index: 3, kind: output, shape index: {}]
  %s4 = sld [smem:[#allocation0]]
  $region45: #{gnn_forward.5} parent=0
    _
  %s6 = ssub.s32 1, %s4
  %s7 = scalar_select 0, %s6, %s4
  loop: start=0, step=1, limit=4
  $region2: #{gnn_forward.5} parent=0 // loop_pre_header
    _
  $region3: #{gnn_forward.5} parent=0 // loop_header
    %s9 = sphi 0, %s13
    %p10 = scmp.ge.s32.totalorder %s9, 4
    %s19 = sphi 0, %s21
    %s22 = sphi 0, %s19
    %s23 = sphi 0, %s22
    %s39 = sphi 0, %s23
    %s43 = sphi 0, %s43
    %s45 = sphi 0, %s43
    %s46 = sphi 0, %s45
    %s60 = sphi 0, %s46
    %s64 = sphi 0, %s64
    %s66 = sphi 0, %s64
    %s67 = sphi 0, %s66
    %s81 = sphi 0, %s67
    %s87 = sphi 0, %s89
    %s90 = sphi 0, %s87
    %s91 = sphi 0, %s90
    %s107 = sphi 0, %s91
  $region4: #{gnn_forward.5} parent=0 // loop_header_branch
    %12 = sbr.rel (%p10) target = $region8
  $region5: #{gnn_forward.5} parent=0 // loop_body
    %s14 = ssub.s32 %s9, 1
    %s15 = ssub.s32 %s9, 2
    %s16 = sadd.s32 %s9, 1
    %s17 = ssub.s32 %s9, %s16
    %p18 = scmp.eq.s32.totalorder %s17, 0
    %s20 = sadd.s32 %s19, 1
    %s21 = scalar_select %p18, %s19, %s20
    %p24 = pneg %p18
    %p25 = scmp.eq.s32.totalorder %s9, 1
    %p26 = por %p24, %p25
    %p27 = scmp.ne.s32.totalorder %s19, %s22
    %p28 = scmp.eq.s32.totalorder %s9, 0
    %p29 = por %p27, %p28
    %p30 = scmp.ne.s32.totalorder %s19, %s22
    %p31 = scmp.eq.s32.totalorder %s14, 1
    %p32 = por %p30, %p31
    %p33 = scmp.ne.s32.totalorder %s22, %s23
    %p34 = scmp.eq.s32.totalorder %s14, 0
    %p35 = por %p33, %p34
    %p36 = scmp.ne.s32.totalorder %s22, %s23
    %p37 = scmp.eq.s32.totalorder %s15, 1
    %p38 = por %p36, %p37
    %p40 = scmp.ne.s32.totalorder %s23, %s39
    %p41 = scmp.eq.s32.totalorder %s15, 0
    %p42 = por %p40, %p41
    %s44 = sadd.s32 %s43, 1
    %p47 = scmp.eq.s32.totalorder %s9, 1
    %p48 = scmp.ne.s32.totalorder %s43, %s45
    %p49 = scmp.eq.s32.totalorder %s9, 0
    %p50 = por %p48, %p49
    %p51 = scmp.ne.s32.totalorder %s43, %s45
    %p52 = scmp.eq.s32.totalorder %s14, 1
    %p53 = por %p51, %p52
    %p54 = scmp.ne.s32.totalorder %s45, %s46
    %p55 = scmp.eq.s32.totalorder %s14, 0
    %p56 = por %p54, %p55
    %p57 = scmp.ne.s32.totalorder %s45, %s46
    %p58 = scmp.eq.s32.totalorder %s15, 1
    %p59 = por %p57, %p58
    %p61 = scmp.ne.s32.totalorder %s46, %s60
    %p62 = scmp.eq.s32.totalorder %s15, 0
    %p63 = por %p61, %p62
    %s65 = sadd.s32 %s64, 1
    %p68 = scmp.eq.s32.totalorder %s9, 1
    %p69 = scmp.ne.s32.totalorder %s64, %s66
    %p70 = scmp.eq.s32.totalorder %s9, 0
    %p71 = por %p69, %p70
    %p72 = scmp.ne.s32.totalorder %s64, %s66
    %p73 = scmp.eq.s32.totalorder %s14, 1
    %p74 = por %p72, %p73
    %p75 = scmp.ne.s32.totalorder %s66, %s67
    %p76 = scmp.eq.s32.totalorder %s14, 0
    %p77 = por %p75, %p76
    %p78 = scmp.ne.s32.totalorder %s66, %s67
    %p79 = scmp.eq.s32.totalorder %s15, 1
    %p80 = por %p78, %p79
    %p82 = scmp.ne.s32.totalorder %s67, %s81
    %p83 = scmp.eq.s32.totalorder %s15, 0
    %p84 = por %p82, %p83
    %s85 = ssub.s32 %s9, %s16
    %p86 = scmp.eq.s32.totalorder %s85, 0
    %s88 = sadd.s32 %s87, 1
    %s89 = scalar_select %p86, %s87, %s88
    %p92 = pneg %p86
    %p93 = scmp.eq.s32.totalorder %s9, 1
    %p94 = por %p92, %p93
    %p95 = scmp.ne.s32.totalorder %s87, %s90
    %p96 = scmp.eq.s32.totalorder %s9, 0
    %p97 = por %p95, %p96
    %p98 = scmp.ne.s32.totalorder %s87, %s90
    %p99 = scmp.eq.s32.totalorder %s14, 1
    %p100 = por %p98, %p99
    %p101 = scmp.ne.s32.totalorder %s90, %s91
    %p102 = scmp.eq.s32.totalorder %s14, 0
    %p103 = por %p101, %p102
    %p104 = scmp.ne.s32.totalorder %s90, %s91
    %p105 = scmp.eq.s32.totalorder %s15, 1
    %p106 = por %p104, %p105
    %p108 = scmp.ne.s32.totalorder %s91, %s107
    %p109 = scmp.eq.s32.totalorder %s15, 0
    %p110 = por %p108, %p109
    %p111 = scmp.le.s32.totalorder 1, %s9
    %p112 = scmp.lt.s32.totalorder %s9, 3
    %p113 = pnand %p111, %p112
    %p114 = pneg %p113
    // Predicated region
    $region9: #{gnn_forward.5} parent=5 // pred_check
      _
    $region10: #{gnn_forward.5} parent=5 // pred_check_branch
      %116 = sbr.rel (%p113) target = $region12
    $region11: #{gnn_forward.5} parent=5 // pred_region
      %s117 = ssub.s32 %s9, 1
      // Predicated region
      $region13: #{gnn_forward.5} parent=11 // pred_check
        %p118 = pneg %p56
      $region14: #{gnn_forward.5} parent=11 // pred_check_branch
        %120 = sbr.rel (%p118) target = $region16
      $region15: #{gnn_forward.5} parent=11 // pred_region
        _
      $region16: #{gnn_forward.5} parent=11 // pred_fallthru
        _
      // Predicated region
      $region17: #{gnn_forward.5} parent=11 // pred_check
        %p121 = pneg %p77
      $region18: #{gnn_forward.5} parent=11 // pred_check_branch
        %123 = sbr.rel (%p121) target = $region20
      $region19: #{gnn_forward.5} parent=11 // pred_region
        _
      $region20: #{gnn_forward.5} parent=11 // pred_fallthru
        _
    $region12: #{gnn_forward.5} parent=5 // pred_fallthru
      _
    %p124 = scmp.lt.s32.totalorder %s9, 2
    // Predicated region
    $region21: #{gnn_forward.5} parent=5 // pred_check
      %p125 = pneg %p124
    $region22: #{gnn_forward.5} parent=5 // pred_check_branch
      %127 = sbr.rel (%p125) target = $region24
    $region23: #{gnn_forward.5} parent=5 // pred_region
      // Predicated region
      $region25: #{gnn_forward.5} parent=23 // pred_check
        %p128 = pneg %p29
      $region26: #{gnn_forward.5} parent=23 // pred_check_branch
        %130 = sbr.rel (%p128) target = $region28
      $region27: #{gnn_forward.5} parent=23 // pred_region
        %s131 = smul.u32 8, %s9
        %p132 = scmp.lt.s32.totalorder %s131, 15
        %s133 = scalar_select %p132, %s131, 15
        %s134 = smul.addr %s133, 4
        %s135 = scalar_lea.vmem %s0, %s134
        %s136 = smul.u32 8, %s9
      $region28: #{gnn_forward.5} parent=23 // pred_fallthru
        _
    $region24: #{gnn_forward.5} parent=5 // pred_fallthru
      _
    %p137 = scmp.le.s32.totalorder 1, %s9
    %p138 = scmp.lt.s32.totalorder %s9, 3
    %p139 = pnand %p137, %p138
    %p140 = pneg %p139
    // Predicated region
    $region29: #{gnn_forward.5} parent=5 // pred_check
      _
    $region30: #{gnn_forward.5} parent=5 // pred_check_branch
      %142 = sbr.rel (%p139) target = $region32
    $region31: #{gnn_forward.5} parent=5 // pred_region
      %s143 = ssub.s32 %s9, 1
      %s144 = smul.u32 8, %s14
      %p145 = scmp.lt.s32.totalorder %s144, 15
      %s146 = scalar_select %p145, %s144, 15
      %s147 = smul.addr %s146, 4
      %s148 = scalar_lea.vmem %s0, %s147
      %p149 = pneg %p35
      %p150 = pneg %p32
      %p151 = pneg %p56
      %p152 = pneg %p53
      %p153 = pneg %p77
      %p154 = pneg %p74
      %p155 = pneg %p103
      %p156 = pneg %p100
      %s157 = smul.u32 8, %s14
      %p158 = scmp.lt.s32.totalorder %s157, 15
      %s159 = scalar_select %p158, %s157, 15
      %s160 = smul.addr %s159, 4
      %s161 = scalar_lea.vmem %s3, %s160
      %s162 = smul.u32 8, %s14
      %p163 = scmp.lt.s32.totalorder %s162, 15
      %s164 = scalar_select %p163, %s162, 15
      %s165 = smul.addr %s164, 4
      %s166 = scalar_lea.vmem %s0, %s165
      %s167 = smul.u32 8, %s14
      %s168 = smul.u32 8, %s14
      %p169 = scmp.lt.s32.totalorder %s168, 15
      %s170 = scalar_select %p169, %s168, 15
      %s171 = smul.addr %s170, 4
      %s172 = scalar_lea.vmem %s3, %s171
      %s173 = smul.u32 8, %s14
      %v175 = vld [vmem:[%s166] sm:$0xf]
      %v176 = vld [vmem:[%s166 + $0x4] sm:$0xf]
      %v177 = vld [vmem:[%s166 + $0x8] sm:$0xf]
      %v178 = vld [vmem:[%s166 + $0xc] sm:$0xf]
      %v179 = vld [vmem:[%s166 + $0x10] sm:$0xf]
      %v180 = vld [vmem:[%s166 + $0x14] sm:$0xf]
      %v181 = vld [vmem:[%s166 + $0x18] sm:$0xf]
      %v182 = vld [vmem:[%s166 + $0x1c] sm:$0xf]
      %v183 = vld [vmem:[%s1] sm:$0xf]
      %v184 = vld [vmem:[%s1 + $0x4] sm:$0xf]
      %v185 = vld [vmem:[%s1 + $0x8] sm:$0xf]
      %v186 = vld [vmem:[%s1 + $0xc] sm:$0xf]
      %v187 = vld [vmem:[%s1 + $0x10] sm:$0xf]
      %v188 = vld [vmem:[%s1 + $0x14] sm:$0xf]
      %v189 = vld [vmem:[%s1 + $0x18] sm:$0xf]
      %v190 = vld [vmem:[%s1 + $0x1c] sm:$0xf]
      %v191 = vld [vmem:[%s1 + $0x20] sm:$0xf]
      %v192 = vld [vmem:[%s1 + $0x24] sm:$0xf]
      %v193 = vld [vmem:[%s1 + $0x28] sm:$0xf]
      %v194 = vld [vmem:[%s1 + $0x2c] sm:$0xf]
      %v195 = vld [vmem:[%s1 + $0x30] sm:$0xf]
      %v196 = vld [vmem:[%s1 + $0x34] sm:$0xf]
      %v197 = vld [vmem:[%s1 + $0x38] sm:$0xf]
      %v198 = vld [vmem:[%s1 + $0x3c] sm:$0xf]
      %v199 = vld [vmem:[%s2] sm:$0x1]
      %v201 = vlaneseq
      %v202 = vshrl.u32 %v201, 7
      %v203 = vsub.s32 0, %v202
      %v204 = vrot.slane %v199, %v203
      %v214 = vunpack.c.l.b16 %v175
      %v215 = vunpack.c.l.b16 %v176
      %v216 = vunpack.c.l.b16 %v177
      %v217 = vunpack.c.l.b16 %v178
      %v218 = vunpack.c.l.b16 %v179
      %v219 = vunpack.c.l.b16 %v180
      %v220 = vunpack.c.l.b16 %v181
      %v221 = vunpack.c.l.b16 %v182
      %v222 = vpack.c.b16 %v215, %v214
      %v223 = vpack.c.b16 %v217, %v216
      %v224 = vpack.c.b16 %v219, %v218
      %v225 = vpack.c.b16 %v221, %v220
      %v246 = vunpack.c.l.b16 %v183
      %v247 = vunpack.c.l.b16 %v184
      %v248 = vunpack.c.l.b16 %v185
      %v249 = vunpack.c.l.b16 %v186
      %v250 = vunpack.c.l.b16 %v187
      %v251 = vunpack.c.l.b16 %v188
      %v252 = vunpack.c.l.b16 %v189
      %v253 = vunpack.c.l.b16 %v190
      %v254 = vunpack.c.l.b16 %v191
      %v255 = vunpack.c.l.b16 %v192
      %v256 = vunpack.c.l.b16 %v193
      %v257 = vunpack.c.l.b16 %v194
      %v258 = vunpack.c.l.b16 %v195
      %v259 = vunpack.c.l.b16 %v196
      %v260 = vunpack.c.l.b16 %v197
      %v261 = vunpack.c.l.b16 %v198
      %v262 = vpack.c.b16 %v247, %v246
      %v263 = vpack.c.b16 %v249, %v248
      %v264 = vpack.c.b16 %v251, %v250
      %v265 = vpack.c.b16 %v253, %v252
      %v266 = vpack.c.b16 %v255, %v254
      %v267 = vpack.c.b16 %v257, %v256
      %v268 = vpack.c.b16 %v259, %v258
      %v269 = vpack.c.b16 %v261, %v260
      %278 = vmatprep.subr.bf16.mxu0 0
      %279 = vmatpush1.bf16.msra.mxu0 %v262
      %280 = vmatprep.subr.bf16.mxu0 0
      %281 = vmatpush1.bf16.msra.mxu0 %v263
      %282 = vmatprep.subr.bf16.mxu0 0
      %283 = vmatpush1.bf16.msra.mxu0 %v264
      %284 = vmatprep.subr.bf16.mxu0 0
      %285 = vmatpush1.bf16.msra.mxu0 %v265
      %286 = vmatprep.subr.bf16.mxu0 0
      %287 = vmatpush1.bf16.msra.mxu0 %v266
      %288 = vmatprep.subr.bf16.mxu0 0
      %289 = vmatpush1.bf16.msra.mxu0 %v267
      %290 = vmatprep.subr.bf16.mxu0 0
      %291 = vmatpush1.bf16.msra.mxu0 %v268
      %292 = vmatprep.subr.bf16.mxu0 0
      %293 = vmatpush1.bf16.msra.mxu0 %v269
      %294 = vmatprep.subr.bf16.mxu0 0
      %295 = vmatpush1.bf16.msra.mxu0 0
      %296 = vmatprep.subr.bf16.mxu0 0
      %297 = vmatpush1.bf16.msra.mxu0 0
      %298 = vmatprep.subr.bf16.mxu0 0
      %299 = vmatpush1.bf16.msra.mxu0 0
      %300 = vmatprep.subr.bf16.mxu0 0
      %301 = vmatpush1.bf16.msra.mxu0 0
      %302 = vmatprep.subr.bf16.mxu0 0
      %303 = vmatpush1.bf16.msra.mxu0 0
      %304 = vmatprep.subr.bf16.mxu0 0
      %305 = vmatpush1.bf16.msra.mxu0 0
      %306 = vmatprep.subr.bf16.mxu0 0
      %307 = vmatpush1.bf16.msra.mxu0 0
      %308 = vmatprep.subr.bf16.mxu0 0
      %309 = vmatpush1.bf16.msra.mxu0 0
      %310 = vmatprep.mubr.bf16.mxu0 0
      %311 = vmatmul.mubr.bf16.gmra.mrb[0].mxu0 %v222
      %v312 = vpop.f32.mrb[0].mxu0
      %v313 = vadd.f32 %v204, %v312
      %v314 = vpop.f32.mrb[0].mxu0
      %v315 = vpop.f32.mrb[0].mxu0
      %v316 = vadd.f32 %v204, %v315
      %v317 = vpop.f32.mrb[0].mxu0
      %318 = vmatprep.mubr.bf16.mxu0 0
      %319 = vmatmul.mubr.bf16.gmra.mrb[0].mxu0 %v223
      %v320 = vpop.f32.mrb[0].mxu0
      %v321 = vadd.f32 %v204, %v320
      %v322 = vpop.f32.mrb[0].mxu0
      %v323 = vpop.f32.mrb[0].mxu0
      %v324 = vadd.f32 %v204, %v323
      %v325 = vpop.f32.mrb[0].mxu0
      %326 = vmatprep.mubr.bf16.mxu0 0
      %327 = vmatmul.mubr.bf16.gmra.mrb[0].mxu0 %v224
      %v328 = vpop.f32.mrb[0].mxu0
      %v329 = vadd.f32 %v204, %v328
      %v330 = vpop.f32.mrb[0].mxu0
      %v331 = vpop.f32.mrb[0].mxu0
      %v332 = vadd.f32 %v204, %v331
      %v333 = vpop.f32.mrb[0].mxu0
      %334 = vmatprep.mubr.bf16.mxu0 0
      %335 = vmatmul.mubr.bf16.gmra.mrb[0].mxu0 %v225
      %v336 = vpop.f32.mrb[0].mxu0
      %v337 = vadd.f32 %v204, %v336
      %v338 = vpop.f32.mrb[0].mxu0
      %v339 = vpop.f32.mrb[0].mxu0
      %v340 = vadd.f32 %v204, %v339
      %v341 = vpop.f32.mrb[0].mxu0
      %342 = vdwg.mxu0
      %v343 = vmax.f32 %v313, 0.0
      %v344 = vmax.f32 %v316, 0.0
      %v345 = vmax.f32 %v321, 0.0
      %v346 = vmax.f32 %v324, 0.0
      %v347 = vmax.f32 %v329, 0.0
      %v348 = vmax.f32 %v332, 0.0
      %v349 = vmax.f32 %v337, 0.0
      %v350 = vmax.f32 %v340, 0.0
      %v351 = vpack.c.bf16 %v344, %v343
      %v352 = vpack.c.bf16 %v346, %v345
      %v353 = vpack.c.bf16 %v348, %v347
      %v354 = vpack.c.bf16 %v350, %v349
      %v359 = vunpack.c.l.b16 %v351
      %v360 = vunpack.c.h.b16 %v351
      %v361 = vunpack.c.l.b16 %v352
      %v362 = vunpack.c.h.b16 %v352
      %v363 = vunpack.c.l.b16 %v353
      %v364 = vunpack.c.h.b16 %v353
      %v365 = vunpack.c.l.b16 %v354
      %v366 = vunpack.c.h.b16 %v354
      %v367 = vpack.c.b16 %v359, %v359
      %v368 = vpack.c.b16 %v360, %v360
      %v369 = vpack.c.b16 %v361, %v361
      %v370 = vpack.c.b16 %v362, %v362
      %v371 = vpack.c.b16 %v363, %v363
      %v372 = vpack.c.b16 %v364, %v364
      %v373 = vpack.c.b16 %v365, %v365
      %v374 = vpack.c.b16 %v366, %v366
      %383 = vst [vmem:[%s172] sm:$0xf] %v367
      %384 = vst [vmem:[%s172 + $0x4] sm:$0xf] %v368
      %385 = vst [vmem:[%s172 + $0x8] sm:$0xf] %v369
      %386 = vst [vmem:[%s172 + $0xc] sm:$0xf] %v370
      %387 = vst [vmem:[%s172 + $0x10] sm:$0xf] %v371
      %388 = vst [vmem:[%s172 + $0x14] sm:$0xf] %v372
      %389 = vst [vmem:[%s172 + $0x18] sm:$0xf] %v373
      %390 = vst [vmem:[%s172 + $0x1c] sm:$0xf] %v374
      %s391 = smul.u32 8, %s14
      %p392 = scmp.lt.s32.totalorder %s391, 15
      %s393 = scalar_select %p392, %s391, 15
      %s394 = smul.addr %s393, 4
      %s395 = scalar_lea.vmem %s3, %s394
      // Predicated region
      $region33: #{gnn_forward.5} parent=31 // pred_check
        %p396 = pneg %p100
      $region34: #{gnn_forward.5} parent=31 // pred_check_branch
        %398 = sbr.rel (%p396) target = $region36
      $region35: #{gnn_forward.5} parent=31 // pred_region
        %s399 = smul.u32 8, %s14
      $region36: #{gnn_forward.5} parent=31 // pred_fallthru
        _
    $region32: #{gnn_forward.5} parent=5 // pred_fallthru
      _
    %p400 = scmp.le.s32.totalorder 2, %s9
    // Predicated region
    $region37: #{gnn_forward.5} parent=5 // pred_check
      %p401 = pneg %p400
    $region38: #{gnn_forward.5} parent=5 // pred_check_branch
      %403 = sbr.rel (%p401) target = $region40
    $region39: #{gnn_forward.5} parent=5 // pred_region
      %s404 = ssub.s32 %s9, 2
      // Predicated region
      $region41: #{gnn_forward.5} parent=39 // pred_check
        %p405 = pneg %p106
      $region42: #{gnn_forward.5} parent=39 // pred_check_branch
        %407 = sbr.rel (%p405) target = $region44
      $region43: #{gnn_forward.5} parent=39 // pred_region
        %s408 = smul.u32 8, %s15
        %p409 = scmp.lt.s32.totalorder %s408, 15
        %s410 = scalar_select %p409, %s408, 15
        %s411 = smul.addr %s410, 4
        %s412 = scalar_lea.vmem %s3, %s411
      $region44: #{gnn_forward.5} parent=39 // pred_fallthru
        _
    $region40: #{gnn_forward.5} parent=5 // pred_fallthru
      _
  $region6: #{gnn_forward.5} parent=0 // loop_footer
    %s13 = sadd.s32 1, %s9
  $region7: #{gnn_forward.5} parent=0 // loop_footer_branch
    %8 = sbr.rel target = $region3
  $region8: #{gnn_forward.5} parent=0 // loop_exit
    _

// kernel: gnn_forward.7
$region0: #{gnn_forward.7}
  #allocation0 [shape = 'u32[]', space=smem, size = 0x4, offset = 0x4, fixed_abs, tag = 'smem constant byte address 0x4 - core index']
  #allocation1 [shape = 'u32[144,128]{1,0:T(1,128)}', space=vmem, size = 0x12000, scoped, tag = 'internal scratch']
  %s0 = inlined_call_operand.vmem [shape: bf16[128,128], index: 0, kind: input, shape index: {}]
  %s1 = inlined_call_operand.vmem [shape: bf16[128,128], index: 1, kind: input, shape index: {}]
  %s2 = inlined_call_operand.vmem [shape: f32[1,128], index: 2, kind: input, shape index: {}]
  %s3 = inlined_call_operand.vmem [shape: f32[128,128], index: 3, kind: output, shape index: {}]
  %s4 = sld [smem:[#allocation0]]
  $region45: #{gnn_forward.7} parent=0
    _
  %s6 = ssub.s32 1, %s4
  %s7 = scalar_select 0, %s6, %s4
  loop: start=0, step=1, limit=4
  $region2: #{gnn_forward.7} parent=0 // loop_pre_header
    _
  $region3: #{gnn_forward.7} parent=0 // loop_header
    %s9 = sphi 0, %s13
    %p10 = scmp.ge.s32.totalorder %s9, 4
    %s19 = sphi 0, %s21
    %s22 = sphi 0, %s19
    %s23 = sphi 0, %s22
    %s39 = sphi 0, %s23
    %s43 = sphi 0, %s43
    %s45 = sphi 0, %s43
    %s46 = sphi 0, %s45
    %s60 = sphi 0, %s46
    %s64 = sphi 0, %s64
    %s66 = sphi 0, %s64
    %s67 = sphi 0, %s66
    %s81 = sphi 0, %s67
    %s87 = sphi 0, %s89
    %s90 = sphi 0, %s87
    %s91 = sphi 0, %s90
    %s107 = sphi 0, %s91
  $region4: #{gnn_forward.7} parent=0 // loop_header_branch
    %12 = sbr.rel (%p10) target = $region8
  $region5: #{gnn_forward.7} parent=0 // loop_body
    %s14 = ssub.s32 %s9, 1
    %s15 = ssub.s32 %s9, 2
    %s16 = sadd.s32 %s9, 1
    %s17 = ssub.s32 %s9, %s16
    %p18 = scmp.eq.s32.totalorder %s17, 0
    %s20 = sadd.s32 %s19, 1
    %s21 = scalar_select %p18, %s19, %s20
    %p24 = pneg %p18
    %p25 = scmp.eq.s32.totalorder %s9, 1
    %p26 = por %p24, %p25
    %p27 = scmp.ne.s32.totalorder %s19, %s22
    %p28 = scmp.eq.s32.totalorder %s9, 0
    %p29 = por %p27, %p28
    %p30 = scmp.ne.s32.totalorder %s19, %s22
    %p31 = scmp.eq.s32.totalorder %s14, 1
    %p32 = por %p30, %p31
    %p33 = scmp.ne.s32.totalorder %s22, %s23
    %p34 = scmp.eq.s32.totalorder %s14, 0
    %p35 = por %p33, %p34
    %p36 = scmp.ne.s32.totalorder %s22, %s23
    %p37 = scmp.eq.s32.totalorder %s15, 1
    %p38 = por %p36, %p37
    %p40 = scmp.ne.s32.totalorder %s23, %s39
    %p41 = scmp.eq.s32.totalorder %s15, 0
    %p42 = por %p40, %p41
    %s44 = sadd.s32 %s43, 1
    %p47 = scmp.eq.s32.totalorder %s9, 1
    %p48 = scmp.ne.s32.totalorder %s43, %s45
    %p49 = scmp.eq.s32.totalorder %s9, 0
    %p50 = por %p48, %p49
    %p51 = scmp.ne.s32.totalorder %s43, %s45
    %p52 = scmp.eq.s32.totalorder %s14, 1
    %p53 = por %p51, %p52
    %p54 = scmp.ne.s32.totalorder %s45, %s46
    %p55 = scmp.eq.s32.totalorder %s14, 0
    %p56 = por %p54, %p55
    %p57 = scmp.ne.s32.totalorder %s45, %s46
    %p58 = scmp.eq.s32.totalorder %s15, 1
    %p59 = por %p57, %p58
    %p61 = scmp.ne.s32.totalorder %s46, %s60
    %p62 = scmp.eq.s32.totalorder %s15, 0
    %p63 = por %p61, %p62
    %s65 = sadd.s32 %s64, 1
    %p68 = scmp.eq.s32.totalorder %s9, 1
    %p69 = scmp.ne.s32.totalorder %s64, %s66
    %p70 = scmp.eq.s32.totalorder %s9, 0
    %p71 = por %p69, %p70
    %p72 = scmp.ne.s32.totalorder %s64, %s66
    %p73 = scmp.eq.s32.totalorder %s14, 1
    %p74 = por %p72, %p73
    %p75 = scmp.ne.s32.totalorder %s66, %s67
    %p76 = scmp.eq.s32.totalorder %s14, 0
    %p77 = por %p75, %p76
    %p78 = scmp.ne.s32.totalorder %s66, %s67
    %p79 = scmp.eq.s32.totalorder %s15, 1
    %p80 = por %p78, %p79
    %p82 = scmp.ne.s32.totalorder %s67, %s81
    %p83 = scmp.eq.s32.totalorder %s15, 0
    %p84 = por %p82, %p83
    %s85 = ssub.s32 %s9, %s16
    %p86 = scmp.eq.s32.totalorder %s85, 0
    %s88 = sadd.s32 %s87, 1
    %s89 = scalar_select %p86, %s87, %s88
    %p92 = pneg %p86
    %p93 = scmp.eq.s32.totalorder %s9, 1
    %p94 = por %p92, %p93
    %p95 = scmp.ne.s32.totalorder %s87, %s90
    %p96 = scmp.eq.s32.totalorder %s9, 0
    %p97 = por %p95, %p96
    %p98 = scmp.ne.s32.totalorder %s87, %s90
    %p99 = scmp.eq.s32.totalorder %s14, 1
    %p100 = por %p98, %p99
    %p101 = scmp.ne.s32.totalorder %s90, %s91
    %p102 = scmp.eq.s32.totalorder %s14, 0
    %p103 = por %p101, %p102
    %p104 = scmp.ne.s32.totalorder %s90, %s91
    %p105 = scmp.eq.s32.totalorder %s15, 1
    %p106 = por %p104, %p105
    %p108 = scmp.ne.s32.totalorder %s91, %s107
    %p109 = scmp.eq.s32.totalorder %s15, 0
    %p110 = por %p108, %p109
    %p111 = scmp.le.s32.totalorder 1, %s9
    %p112 = scmp.lt.s32.totalorder %s9, 3
    %p113 = pnand %p111, %p112
    %p114 = pneg %p113
    // Predicated region
    $region9: #{gnn_forward.7} parent=5 // pred_check
      _
    $region10: #{gnn_forward.7} parent=5 // pred_check_branch
      %116 = sbr.rel (%p113) target = $region12
    $region11: #{gnn_forward.7} parent=5 // pred_region
      %s117 = ssub.s32 %s9, 1
      // Predicated region
      $region13: #{gnn_forward.7} parent=11 // pred_check
        %p118 = pneg %p56
      $region14: #{gnn_forward.7} parent=11 // pred_check_branch
        %120 = sbr.rel (%p118) target = $region16
      $region15: #{gnn_forward.7} parent=11 // pred_region
        _
      $region16: #{gnn_forward.7} parent=11 // pred_fallthru
        _
      // Predicated region
      $region17: #{gnn_forward.7} parent=11 // pred_check
        %p121 = pneg %p77
      $region18: #{gnn_forward.7} parent=11 // pred_check_branch
        %123 = sbr.rel (%p121) target = $region20
      $region19: #{gnn_forward.7} parent=11 // pred_region
        _
      $region20: #{gnn_forward.7} parent=11 // pred_fallthru
        _
    $region12: #{gnn_forward.7} parent=5 // pred_fallthru
      _
    %p124 = scmp.lt.s32.totalorder %s9, 2
    // Predicated region
    $region21: #{gnn_forward.7} parent=5 // pred_check
      %p125 = pneg %p124
    $region22: #{gnn_forward.7} parent=5 // pred_check_branch
      %127 = sbr.rel (%p125) target = $region24
    $region23: #{gnn_forward.7} parent=5 // pred_region
      // Predicated region
      $region25: #{gnn_forward.7} parent=23 // pred_check
        %p128 = pneg %p29
      $region26: #{gnn_forward.7} parent=23 // pred_check_branch
        %130 = sbr.rel (%p128) target = $region28
      $region27: #{gnn_forward.7} parent=23 // pred_region
        %s131 = smul.u32 8, %s9
        %p132 = scmp.lt.s32.totalorder %s131, 15
        %s133 = scalar_select %p132, %s131, 15
        %s134 = smul.addr %s133, 4
        %s135 = scalar_lea.vmem %s0, %s134
        %s136 = smul.u32 8, %s9
      $region28: #{gnn_forward.7} parent=23 // pred_fallthru
        _
    $region24: #{gnn_forward.7} parent=5 // pred_fallthru
      _
    %p137 = scmp.le.s32.totalorder 1, %s9
    %p138 = scmp.lt.s32.totalorder %s9, 3
    %p139 = pnand %p137, %p138
    %p140 = pneg %p139
    // Predicated region
    $region29: #{gnn_forward.7} parent=5 // pred_check
      _
    $region30: #{gnn_forward.7} parent=5 // pred_check_branch
      %142 = sbr.rel (%p139) target = $region32
    $region31: #{gnn_forward.7} parent=5 // pred_region
      %s143 = ssub.s32 %s9, 1
      %s144 = smul.u32 8, %s14
      %p145 = scmp.lt.s32.totalorder %s144, 15
      %s146 = scalar_select %p145, %s144, 15
      %s147 = smul.addr %s146, 4
      %s148 = scalar_lea.vmem %s0, %s147
      %p149 = pneg %p35
      %p150 = pneg %p32
      %p151 = pneg %p56
      %p152 = pneg %p53
      %p153 = pneg %p77
      %p154 = pneg %p74
      %p155 = pneg %p103
      %p156 = pneg %p100
      %s157 = smul.u32 8, %s14
      %p158 = scmp.lt.s32.totalorder %s157, 15
      %s159 = scalar_select %p158, %s157, 15
      %s160 = smul.addr %s159, 8
      %s161 = scalar_lea.vmem %s3, %s160
      %s162 = smul.u32 8, %s14
      %p163 = scmp.lt.s32.totalorder %s162, 15
      %s164 = scalar_select %p163, %s162, 15
      %s165 = smul.addr %s164, 4
      %s166 = scalar_lea.vmem %s0, %s165
      %s167 = smul.u32 8, %s14
      %s168 = smul.u32 8, %s14
      %p169 = scmp.lt.s32.totalorder %s168, 15
      %s170 = scalar_select %p169, %s168, 15
      %s171 = smul.addr %s170, 8
      %s172 = scalar_lea.vmem %s3, %s171
      %s173 = smul.u32 8, %s14
      %v175 = vld [vmem:[%s166] sm:$0xf]
      %v176 = vld [vmem:[%s166 + $0x4] sm:$0xf]
      %v177 = vld [vmem:[%s166 + $0x8] sm:$0xf]
      %v178 = vld [vmem:[%s166 + $0xc] sm:$0xf]
      %v179 = vld [vmem:[%s166 + $0x10] sm:$0xf]
      %v180 = vld [vmem:[%s166 + $0x14] sm:$0xf]
      %v181 = vld [vmem:[%s166 + $0x18] sm:$0xf]
      %v182 = vld [vmem:[%s166 + $0x1c] sm:$0xf]
      %v183 = vld [vmem:[%s1] sm:$0xf]
      %v184 = vld [vmem:[%s1 + $0x4] sm:$0xf]
      %v185 = vld [vmem:[%s1 + $0x8] sm:$0xf]
      %v186 = vld [vmem:[%s1 + $0xc] sm:$0xf]
      %v187 = vld [vmem:[%s1 + $0x10] sm:$0xf]
      %v188 = vld [vmem:[%s1 + $0x14] sm:$0xf]
      %v189 = vld [vmem:[%s1 + $0x18] sm:$0xf]
      %v190 = vld [vmem:[%s1 + $0x1c] sm:$0xf]
      %v191 = vld [vmem:[%s1 + $0x20] sm:$0xf]
      %v192 = vld [vmem:[%s1 + $0x24] sm:$0xf]
      %v193 = vld [vmem:[%s1 + $0x28] sm:$0xf]
      %v194 = vld [vmem:[%s1 + $0x2c] sm:$0xf]
      %v195 = vld [vmem:[%s1 + $0x30] sm:$0xf]
      %v196 = vld [vmem:[%s1 + $0x34] sm:$0xf]
      %v197 = vld [vmem:[%s1 + $0x38] sm:$0xf]
      %v198 = vld [vmem:[%s1 + $0x3c] sm:$0xf]
      %v199 = vld [vmem:[%s2] sm:$0x1]
      %v201 = vlaneseq
      %v202 = vshrl.u32 %v201, 7
      %v203 = vsub.s32 0, %v202
      %v204 = vrot.slane %v199, %v203
      %v214 = vunpack.c.l.b16 %v175
      %v215 = vunpack.c.l.b16 %v176
      %v216 = vunpack.c.l.b16 %v177
      %v217 = vunpack.c.l.b16 %v178
      %v218 = vunpack.c.l.b16 %v179
      %v219 = vunpack.c.l.b16 %v180
      %v220 = vunpack.c.l.b16 %v181
      %v221 = vunpack.c.l.b16 %v182
      %v222 = vpack.c.b16 %v215, %v214
      %v223 = vpack.c.b16 %v217, %v216
      %v224 = vpack.c.b16 %v219, %v218
      %v225 = vpack.c.b16 %v221, %v220
      %v246 = vunpack.c.l.b16 %v183
      %v247 = vunpack.c.l.b16 %v184
      %v248 = vunpack.c.l.b16 %v185
      %v249 = vunpack.c.l.b16 %v186
      %v250 = vunpack.c.l.b16 %v187
      %v251 = vunpack.c.l.b16 %v188
      %v252 = vunpack.c.l.b16 %v189
      %v253 = vunpack.c.l.b16 %v190
      %v254 = vunpack.c.l.b16 %v191
      %v255 = vunpack.c.l.b16 %v192
      %v256 = vunpack.c.l.b16 %v193
      %v257 = vunpack.c.l.b16 %v194
      %v258 = vunpack.c.l.b16 %v195
      %v259 = vunpack.c.l.b16 %v196
      %v260 = vunpack.c.l.b16 %v197
      %v261 = vunpack.c.l.b16 %v198
      %v262 = vpack.c.b16 %v247, %v246
      %v263 = vpack.c.b16 %v249, %v248
      %v264 = vpack.c.b16 %v251, %v250
      %v265 = vpack.c.b16 %v253, %v252
      %v266 = vpack.c.b16 %v255, %v254
      %v267 = vpack.c.b16 %v257, %v256
      %v268 = vpack.c.b16 %v259, %v258
      %v269 = vpack.c.b16 %v261, %v260
      %278 = vmatprep.subr.bf16.mxu0 0
      %279 = vmatpush1.bf16.msra.mxu0 %v262
      %280 = vmatprep.subr.bf16.mxu0 0
      %281 = vmatpush1.bf16.msra.mxu0 %v263
      %282 = vmatprep.subr.bf16.mxu0 0
      %283 = vmatpush1.bf16.msra.mxu0 %v264
      %284 = vmatprep.subr.bf16.mxu0 0
      %285 = vmatpush1.bf16.msra.mxu0 %v265
      %286 = vmatprep.subr.bf16.mxu0 0
      %287 = vmatpush1.bf16.msra.mxu0 %v266
      %288 = vmatprep.subr.bf16.mxu0 0
      %289 = vmatpush1.bf16.msra.mxu0 %v267
      %290 = vmatprep.subr.bf16.mxu0 0
      %291 = vmatpush1.bf16.msra.mxu0 %v268
      %292 = vmatprep.subr.bf16.mxu0 0
      %293 = vmatpush1.bf16.msra.mxu0 %v269
      %294 = vmatprep.subr.bf16.mxu0 0
      %295 = vmatpush1.bf16.msra.mxu0 0
      %296 = vmatprep.subr.bf16.mxu0 0
      %297 = vmatpush1.bf16.msra.mxu0 0
      %298 = vmatprep.subr.bf16.mxu0 0
      %299 = vmatpush1.bf16.msra.mxu0 0
      %300 = vmatprep.subr.bf16.mxu0 0
      %301 = vmatpush1.bf16.msra.mxu0 0
      %302 = vmatprep.subr.bf16.mxu0 0
      %303 = vmatpush1.bf16.msra.mxu0 0
      %304 = vmatprep.subr.bf16.mxu0 0
      %305 = vmatpush1.bf16.msra.mxu0 0
      %306 = vmatprep.subr.bf16.mxu0 0
      %307 = vmatpush1.bf16.msra.mxu0 0
      %308 = vmatprep.subr.bf16.mxu0 0
      %309 = vmatpush1.bf16.msra.mxu0 0
      %310 = vmatprep.mubr.bf16.mxu0 0
      %311 = vmatmul.mubr.bf16.gmra.mrb[0].mxu0 %v222
      %v312 = vpop.f32.mrb[0].mxu0
      %v313 = vadd.f32 %v204, %v312
      %v314 = vpop.f32.mrb[0].mxu0
      %v315 = vpop.f32.mrb[0].mxu0
      %v316 = vadd.f32 %v204, %v315
      %v317 = vpop.f32.mrb[0].mxu0
      %318 = vmatprep.mubr.bf16.mxu0 0
      %319 = vmatmul.mubr.bf16.gmra.mrb[0].mxu0 %v223
      %v320 = vpop.f32.mrb[0].mxu0
      %v321 = vadd.f32 %v204, %v320
      %v322 = vpop.f32.mrb[0].mxu0
      %v323 = vpop.f32.mrb[0].mxu0
      %v324 = vadd.f32 %v204, %v323
      %v325 = vpop.f32.mrb[0].mxu0
      %326 = vmatprep.mubr.bf16.mxu0 0
      %327 = vmatmul.mubr.bf16.gmra.mrb[0].mxu0 %v224
      %v328 = vpop.f32.mrb[0].mxu0
      %v329 = vadd.f32 %v204, %v328
      %v330 = vpop.f32.mrb[0].mxu0
      %v331 = vpop.f32.mrb[0].mxu0
      %v332 = vadd.f32 %v204, %v331
      %v333 = vpop.f32.mrb[0].mxu0
      %334 = vmatprep.mubr.bf16.mxu0 0
      %335 = vmatmul.mubr.bf16.gmra.mrb[0].mxu0 %v225
      %v336 = vpop.f32.mrb[0].mxu0
      %v337 = vadd.f32 %v204, %v336
      %v338 = vpop.f32.mrb[0].mxu0
      %v339 = vpop.f32.mrb[0].mxu0
      %v340 = vadd.f32 %v204, %v339
      %v341 = vpop.f32.mrb[0].mxu0
      %342 = vdwg.mxu0
      %343 = vst [vmem:[%s172] sm:$0xff] %v313
      %344 = vst [vmem:[%s172 + $0x8] sm:$0xff] %v316
      %345 = vst [vmem:[%s172 + $0x10] sm:$0xff] %v321
      %346 = vst [vmem:[%s172 + $0x18] sm:$0xff] %v324
      %347 = vst [vmem:[%s172 + $0x20] sm:$0xff] %v329
      %348 = vst [vmem:[%s172 + $0x28] sm:$0xff] %v332
      %349 = vst [vmem:[%s172 + $0x30] sm:$0xff] %v337
      %350 = vst [vmem:[%s172 + $0x38] sm:$0xff] %v340
      %s351 = smul.u32 8, %s14
      %p352 = scmp.lt.s32.totalorder %s351, 15
      %s353 = scalar_select %p352, %s351, 15
      %s354 = smul.addr %s353, 8
      %s355 = scalar_lea.vmem %s3, %s354
      // Predicated region
      $region33: #{gnn_forward.7} parent=31 // pred_check
        %p356 = pneg %p100
      $region34: #{gnn_forward.7} parent=31 // pred_check_branch
        %358 = sbr.rel (%p356) target = $region36
      $region35: #{gnn_forward.7} parent=31 // pred_region
        %s359 = smul.u32 8, %s14
      $region36: #{gnn_forward.7} parent=31 // pred_fallthru
        _
    $region32: #{gnn_forward.7} parent=5 // pred_fallthru
      _
    %p360 = scmp.le.s32.totalorder 2, %s9
    // Predicated region
    $region37: #{gnn_forward.7} parent=5 // pred_check
      %p361 = pneg %p360
    $region38: #{gnn_forward.7} parent=5 // pred_check_branch
      %363 = sbr.rel (%p361) target = $region40
    $region39: #{gnn_forward.7} parent=5 // pred_region
      %s364 = ssub.s32 %s9, 2
      // Predicated region
      $region41: #{gnn_forward.7} parent=39 // pred_check
        %p365 = pneg %p106
      $region42: #{gnn_forward.7} parent=39 // pred_check_branch
        %367 = sbr.rel (%p365) target = $region44
      $region43: #{gnn_forward.7} parent=39 // pred_region
        %s368 = smul.u32 8, %s15
        %p369 = scmp.lt.s32.totalorder %s368, 15
        %s370 = scalar_select %p369, %s368, 15
        %s371 = smul.addr %s370, 8
        %s372 = scalar_lea.vmem %s3, %s371
      $region44: #{gnn_forward.7} parent=39 // pred_fallthru
        _
    $region40: #{gnn_forward.7} parent=5 // pred_fallthru
      _
  $region6: #{gnn_forward.7} parent=0 // loop_footer
    %s13 = sadd.s32 1, %s9
  $region7: #{gnn_forward.7} parent=0 // loop_footer_branch
    %8 = sbr.rel target = $region3
  $region8: #{gnn_forward.7} parent=0 // loop_exit
    _

</llo_original>
